<compile_context>
chip_gen: v7x
topology: tpu7x:2x2x1
jax: 0.10.0
libtpu: 0.0.40
codegen_flags: <defaults>
</compile_context>

<pallas_src>
import jax
import jax.numpy as jnp
import numpy as np
from jax.experimental import pallas as pl
from jax.experimental.pallas import tpu as pltpu


def _round_up(v, m):
    return ((v + m - 1) // m) * m


def _inv_freq_np(dim, base):
    # matches torch: 1 / base^(arange(0, dim, 2)/dim), stored as float32
    return (1.0 / (base ** (np.arange(0, dim, 2, dtype=np.float64) / dim))).astype(np.float32)


def _make_rope_kernel(tpr):
    def kernel(w_ref, *refs):
        # w_ref:   (tpr, row_dim) f32 — row j holds inv_freq (duplicated for
        #          cat(freqs,freqs)) in token-j's lane range, zeros elsewhere.
        # refs[:tpr]: position columns, each (rows, 1) int32
        # refs[tpr], refs[tpr+1]: cos / sin outputs, (rows, row_dim)
        pos_refs = refs[:tpr]
        cos_ref = refs[tpr]
        sin_ref = refs[tpr + 1]
        # angles[r, l] = pos_of_token(r, l // dim) * inv_freq[(l % dim) % half]
        # built from (rows,1) x (1,row_dim) broadcasts; W is zero outside each
        # token's lane range so the sum is exact (adds +0.0).
        angles = pos_refs[0][...].astype(jnp.float32) * w_ref[0:1, :]
        for j in range(1, tpr):
            angles = angles + pos_refs[j][...].astype(jnp.float32) * w_ref[j:j + 1, :]
        cos_ref[...] = jnp.cos(angles).astype(cos_ref.dtype)
        sin_ref[...] = jnp.sin(angles).astype(sin_ref.dtype)
    return kernel


def deepseek_v3_rotary_embedding(x, position_ids, dim, base=10000.0,
                                 max_tokens_per_tile=2048):
    """Returns (cos, sin), each of shape position_ids.shape + (dim,), dtype x.dtype."""
    assert dim % 2 == 0
    B, S = position_ids.shape
    T = B * S
    out_dtype = x.dtype

    # ---- lane-dense row packing: tpr tokens per 128-lane output row --------
    if dim < 128 and 128 % dim == 0:
        tpr = 128 // dim
    else:
        tpr = 1
    row_dim = tpr * dim

    # ---- inv_freq baked host-side; cat(freqs,freqs) folded into W ----------
    inv_freq = _inv_freq_np(dim, base)                       # (dim/2,)
    per_token = np.concatenate([inv_freq, inv_freq])         # (dim,)
    w_np = np.zeros((tpr, row_dim), dtype=np.float32)
    for j in range(tpr):
        w_np[j, j * dim:(j + 1) * dim] = per_token
    w = jnp.asarray(w_np)

    # ---- tiling over the flattened token axis -------------------------------
    rows_needed = -(-T // tpr)                                # cdiv
    rows_cap = _round_up(max(8, max_tokens_per_tile // tpr), 8)
    rows_tile = min(_round_up(rows_needed, 8), rows_cap)
    rows_total = _round_up(rows_needed, rows_tile)
    t_pad = rows_total * tpr
    grid = (rows_total // rows_tile,)

    pos_flat = position_ids.reshape(-1).astype(jnp.int32)
    if t_pad > T:
        pos_flat = jnp.pad(pos_flat, (0, t_pad - T))
    pos_cols = [pos_flat[j::tpr].reshape(rows_total, 1) for j in range(tpr)]

    itemsize = jnp.dtype(out_dtype).itemsize
    cost = pl.CostEstimate(
        flops=2 * rows_total * row_dim,
        transcendentals=2 * rows_total * row_dim,
        bytes_accessed=2 * rows_total * row_dim * itemsize + t_pad * 4,
    )

    in_specs = [pl.BlockSpec((tpr, row_dim), lambda i: (0, 0))]
    in_specs += [pl.BlockSpec((rows_tile, 1), lambda i: (i, 0)) for _ in range(tpr)]
    out_spec = pl.BlockSpec((rows_tile, row_dim), lambda i: (i, 0))

    cos_p, sin_p = pl.pallas_call(
        _make_rope_kernel(tpr),
        out_shape=(
            jax.ShapeDtypeStruct((rows_total, row_dim), out_dtype),
            jax.ShapeDtypeStruct((rows_total, row_dim), out_dtype),
        ),
        grid=grid,
        in_specs=in_specs,
        out_specs=(out_spec, out_spec),
        compiler_params=pltpu.CompilerParams(
            dimension_semantics=("parallel",),
        ),
        cost_estimate=cost,
    )(w, *pos_cols)

    # (rows_total, tpr*dim) -> (t_pad, dim) is a contiguous, copy-free reshape.
    cos = cos_p.reshape(t_pad, dim)[:T].reshape(B, S, dim)
    sin = sin_p.reshape(t_pad, dim)[:T].reshape(B, S, dim)
    return cos, sin


def _reference(x, position_ids, dim, max_position_embeddings=2048, base=10000.0):
    """Plain-JAX replica of the PyTorch cache-then-gather path."""
    inv_freq = jnp.asarray(_inv_freq_np(dim, base))
    t = jnp.arange(max_position_embeddings, dtype=jnp.float32)
    freqs = jnp.outer(t, inv_freq)
    emb = jnp.concatenate([freqs, freqs], axis=-1)
    cos_cached = jnp.cos(emb).astype(x.dtype)
    sin_cached = jnp.sin(emb).astype(x.dtype)
    return cos_cached[position_ids], sin_cached[position_ids]


if __name__ == "__main__":
    key = jax.random.PRNGKey(0)
    k_x, k_pos = jax.random.split(key)

    B, S, hidden = 2, 8, 32
    dim = 64                      # rotary head dim (qk_rope_head_dim)
    max_position_embeddings = 2048

    x = jax.random.normal(k_x, (B, S, hidden), dtype=jnp.float32)
    position_ids = jax.random.randint(
        k_pos, (B, S), 0, max_position_embeddings, dtype=jnp.int32
    )

    cos, sin = deepseek_v3_rotary_embedding(x, position_ids, dim)
    cos = jax.block_until_ready(cos)
    sin = jax.block_until_ready(sin)

    cos_ref, sin_ref = _reference(x, position_ids, dim, max_position_embeddings)
    np.testing.assert_allclose(np.asarray(cos), np.asarray(cos_ref), rtol=1e-5, atol=1e-5)
    np.testing.assert_allclose(np.asarray(sin), np.asarray(sin_ref), rtol=1e-5, atol=1e-5)

    print("KERNEL_OK")
</pallas_src>

<mosaic_0001>
module attributes {stable_mosaic.version = 11 : i64} {
  func.func @kernel(%arg0: i32, %arg1: memref<2x128xf32, #tpu.memory_space<vmem>>, %arg2: memref<8x1xi32, #tpu.memory_space<vmem>>, %arg3: memref<8x1xi32, #tpu.memory_space<vmem>>, %arg4: memref<8x128xf32, #tpu.memory_space<vmem>>, %arg5: memref<8x128xf32, #tpu.memory_space<vmem>>) attributes {dimension_semantics = [#tpu.dimension_semantics<parallel>], iteration_bounds = array<i64: 1>, scalar_prefetch = 0 : i64, scratch_operands = 0 : i64, tpu.core_type = #tpu.core_type<tc>, window_params = [{pipeline_mode = #tpu.pipeline_mode<synchronous>, transform_indices = @transform_0, window_bounds = array<i64: 2, 128>}, {transform_indices = @transform_1, window_bounds = array<i64: 8, 1>}, {transform_indices = @transform_2, window_bounds = array<i64: 8, 1>}, {transform_indices = @transform_3, window_bounds = array<i64: 8, 128>}, {transform_indices = @transform_4, window_bounds = array<i64: 8, 128>}]} {
    %c0 = arith.constant 0 : index
    %c0_0 = arith.constant 0 : index
    %0 = vector.load %arg2[%c0, %c0_0] : memref<8x1xi32, #tpu.memory_space<vmem>>, vector<8x1xi32>
    %1 = arith.sitofp %0 : vector<8x1xi32> to vector<8x1xf32>
    %c0_1 = arith.constant 0 : index
    %c0_2 = arith.constant 0 : index
    %2 = vector.load %arg1[%c0_1, %c0_2] : memref<2x128xf32, #tpu.memory_space<vmem>>, vector<1x128xf32>
    %3 = vector.broadcast %1 : vector<8x1xf32> to vector<8x128xf32>
    %4 = vector.broadcast %2 : vector<1x128xf32> to vector<8x128xf32>
    %5 = arith.mulf %3, %4 : vector<8x128xf32>
    %c0_3 = arith.constant 0 : index
    %c0_4 = arith.constant 0 : index
    %6 = vector.load %arg3[%c0_3, %c0_4] : memref<8x1xi32, #tpu.memory_space<vmem>>, vector<8x1xi32>
    %7 = arith.sitofp %6 : vector<8x1xi32> to vector<8x1xf32>
    %c1 = arith.constant 1 : index
    %c0_5 = arith.constant 0 : index
    %8 = vector.load %arg1[%c1, %c0_5] : memref<2x128xf32, #tpu.memory_space<vmem>>, vector<1x128xf32>
    %9 = vector.broadcast %7 : vector<8x1xf32> to vector<8x128xf32>
    %10 = vector.broadcast %8 : vector<1x128xf32> to vector<8x128xf32>
    %11 = arith.mulf %9, %10 : vector<8x128xf32>
    %12 = arith.addf %5, %11 : vector<8x128xf32>
    %13 = math.cos %12 : vector<8x128xf32>
    %c0_6 = arith.constant 0 : index
    %c0_7 = arith.constant 0 : index
    %14 = vector.load %arg4[%c0_6, %c0_7] : memref<8x128xf32, #tpu.memory_space<vmem>>, vector<8x128xf32>
    tpu.vector_store %arg4[%c0_6, %c0_7], %13 {strides = array<i32>} : memref<8x128xf32, #tpu.memory_space<vmem>>, vector<8x128xf32>,
    %15 = math.sin %12 : vector<8x128xf32>
    %c0_8 = arith.constant 0 : index
    %c0_9 = arith.constant 0 : index
    %16 = vector.load %arg5[%c0_8, %c0_9] : memref<8x128xf32, #tpu.memory_space<vmem>>, vector<8x128xf32>
    tpu.vector_store %arg5[%c0_8, %c0_9], %15 {strides = array<i32>} : memref<8x128xf32, #tpu.memory_space<vmem>>, vector<8x128xf32>,
    return
  }
  func.func @transform_0(%arg0: i32) -> (i32, i32) {
    %c0_i32 = arith.constant 0 : i32
    %c0_i32_0 = arith.constant 0 : i32
    %c0_i32_1 = arith.constant 0 : i32
    return %c0_i32, %c0_i32_0 : i32, i32
  }
  func.func @transform_1(%arg0: i32) -> (i32, i32) {
    %c0_i32 = arith.constant 0 : i32
    %c0_i32_0 = arith.constant 0 : i32
    return %arg0, %c0_i32 : i32, i32
  }
  func.func @transform_2(%arg0: i32) -> (i32, i32) {
    %c0_i32 = arith.constant 0 : i32
    %c0_i32_0 = arith.constant 0 : i32
    return %arg0, %c0_i32 : i32, i32
  }
  func.func @transform_3(%arg0: i32) -> (i32, i32) {
    %c0_i32 = arith.constant 0 : i32
    %c0_i32_0 = arith.constant 0 : i32
    return %arg0, %c0_i32 : i32, i32
  }
  func.func @transform_4(%arg0: i32) -> (i32, i32) {
    %c0_i32 = arith.constant 0 : i32
    %c0_i32_0 = arith.constant 0 : i32
    return %arg0, %c0_i32 : i32, i32
  }
}

</mosaic_0001>

<llo_original>
// kernel: tpu_custom_call.1
$region0: #{tpu_custom_call.1}
  #allocation0 [shape = 'u32[]', space=smem, size = 0x4, offset = 0x4, fixed_abs, tag = 'smem constant byte address 0x4 - core index']
  #allocation1 [shape = 'u32[144,128]{1,0:T(1,128)}', space=vmem, size = 0x12000, scoped, tag = 'internal scratch']
  %s0 = inlined_call_operand.vmem [shape: f32[2,128], index: 0, kind: input, shape index: {}]
  %s1 = inlined_call_operand.vmem [shape: s32[8,1], index: 1, kind: input, shape index: {}]
  %s2 = inlined_call_operand.vmem [shape: s32[8,1], index: 2, kind: input, shape index: {}]
  %s3 = inlined_call_operand.hbm [shape: f32[8,128], index: 3, kind: output, shape index: {0}]
  %s4 = inlined_call_operand.hbm [shape: f32[8,128], index: 4, kind: output, shape index: {1}]
  %5 = xla_tuple %s3, %s4
  %s6 = sld [smem:[#allocation0]]
  $region30: #{tpu_custom_call.1} parent=0
    _
  %s8 = ssub.s32 1, %s6
  %s9 = scalar_select 0, %s8, %s6
  $region1: #{tpu_custom_call.1} parent=0
    #allocation2 [shape = 'u8[4096]{0}', space=vmem, size = 0x1000, scoped, tag = 'output window, operand 0, single buffered']
    #allocation3 [shape = 's32[1]{0}', space=sflag, size = 0x4, scoped, tag = 'scoped memory for tpu_custom_call.1']
    #allocation4 [shape = 'u8[4096]{0}', space=vmem, size = 0x1000, scoped, tag = 'output window, operand 1, single buffered']
    #allocation5 [shape = 's32[1]{0}', space=sflag, size = 0x4, scoped, tag = 'scoped memory for tpu_custom_call.1']
    %10 = vsyncpa [#allocation3], 0
    %11 = vsyncpa [#allocation5], 0
    // Predicated region
    $region2: #{tpu_custom_call.1} parent=1 // pred_check
      _
    $region3: #{tpu_custom_call.1} parent=1 // pred_check_branch
      %13 = sbr.rel (0) target = $region5
    $region4: #{tpu_custom_call.1} parent=1 // pred_region
      _
    $region5: #{tpu_custom_call.1} parent=1 // pred_fallthru
      _
    // Predicated region
    $region6: #{tpu_custom_call.1} parent=1 // pred_check
      _
    $region7: #{tpu_custom_call.1} parent=1 // pred_check_branch
      %15 = sbr.rel (0) target = $region9
    $region8: #{tpu_custom_call.1} parent=1 // pred_region
      _
    $region9: #{tpu_custom_call.1} parent=1 // pred_fallthru
      _
    // Predicated region
    $region10: #{tpu_custom_call.1} parent=1 // pred_check
      _
    $region11: #{tpu_custom_call.1} parent=1 // pred_check_branch
      %17 = sbr.rel (0) target = $region13
    $region12: #{tpu_custom_call.1} parent=1 // pred_region
      _
    $region13: #{tpu_custom_call.1} parent=1 // pred_fallthru
      _
    %v18 = vld [vmem:[%s1] sm:$0xff]
    %v19 = vcvt.s32.f32 %v18
    %v20 = vld [vmem:[%s0] sm:$0x1]
    %22 = vset.pattern.permute.xlu0 0
    %23 = vperm.xlu0 %22, %v19
    %v24 = vpop.permute.xlu0 %23
    %v26 = vlaneseq
    %v27 = vshrl.u32 %v26, 7
    %v28 = vsub.s32 0, %v27
    %v29 = vrot.slane %v20, %v28
    %v30 = vmul.f32 %v24, %v29
    %v31 = vld [vmem:[%s2] sm:$0xff]
    %v32 = vcvt.s32.f32 %v31
    %v33 = vld [vmem:[%s0 + $0x1] sm:$0x1]
    %35 = vset.pattern.permute.xlu0 0
    %36 = vperm.xlu0 %35, %v32
    %v37 = vpop.permute.xlu0 %36
    %v39 = vlaneseq
    %v40 = vshrl.u32 %v39, 7
    %v41 = vsub.s32 0, %v40
    %v42 = vrot.slane %v33, %v41
    %v43 = vmul.f32 %v37, %v42
    %v44 = vadd.f32 %v30, %v43
    %v45 = vand.u32 2147483647, %v44
    %vm46 = vcmp.le.f32.partialorder %v45, 0.7853982
    %vm47 = vcmp.lt.s32.totalorder %v44, 0
    %v48 = vand.u32 %v44, 2139095040
    %v49 = vshrl.u32 %v48, 23
    %v50 = vsub.s32 %v49, 127
    %v51 = vand.u32 2147483647, %v44
    %v52 = vand.u32 %v51, 8388607
    %v53 = vor.u32 %v52, 8388608
    %v54 = vsub.s32 0, %v53
    %v55 = vadd.s32 %v50, 1
    %vm56 = vcmp.gt.s32.totalorder %v55, 0
    %v57 = vsel %vm56, %v55, 0
    %v58 = vshrl.u32 %v57, 5
    %v59 = vand.u32 %v57, 31
    %v60 = vsub.s32 32, %v59
    %v61 = vshrl.u32 683565275, %v60
    %v62 = vshll.u32 683565275, %v59
    %v63 = vshrl.u32 2475754826, %v60
    %v64 = vor.u32 %v62, %v63
    %v65 = vshll.u32 2475754826, %v59
    %v66 = vshrl.u32 2131351028, %v60
    %v67 = vor.u32 %v65, %v66
    %v68 = vshll.u32 2131351028, %v59
    %v69 = vshrl.u32 2102212464, %v60
    %v70 = vor.u32 %v68, %v69
    %v71 = vshll.u32 2102212464, %v59
    %v72 = vshrl.u32 920167782, %v60
    %v73 = vor.u32 %v71, %v72
    %v74 = vshll.u32 920167782, %v59
    %v75 = vshrl.u32 1326507024, %v60
    %v76 = vor.u32 %v74, %v75
    %vm77 = vcmp.lt.s32.totalorder %v58, 1
    %vm78 = vcmp.lt.s32.totalorder %v58, 2
    %vm79 = vcmp.lt.s32.totalorder %v58, 3
    %vm80 = vcmp.lt.s32.totalorder %v58, 4
    %v81 = vsel %vm77, %v61, %v64
    %v82 = vsel %vm80, %v70, 2102212464
    %v83 = vsel %vm79, %v67, %v82
    %v84 = vsel %vm78, %v81, %v83
    %v85 = vsel %vm77, %v64, %v67
    %v86 = vsel %vm80, %v73, 920167782
    %v87 = vsel %vm79, %v70, %v86
    %v88 = vsel %vm78, %v85, %v87
    %v89 = vsel %vm77, %v67, %v70
    %v90 = vsel %vm80, %v76, 1326507024
    %v91 = vsel %vm79, %v73, %v90
    %v92 = vsel %vm78, %v89, %v91
    %v93 = vshll.u32 %v53, 8
    %v94 = vmul.u32.u64.compose %v93, %v92
    %v95 = vextract.low.u32 %v94
    %v96 = vextract.high.u32 %v94
    %v97 = vmul.u32.u64.compose %v93, %v88
    %v98 = vextract.low.u32 %v97
    %v99 = vextract.high.u32 %v97
    %v100 = vmul.u32 %v93, %v84
    %v101 = vadd.s32 %v96, %v98
    %vm102 = vc.u32 %v96, %v98
    %v103 = vadd.s32 %v99, 1
    %v104 = vsel %vm102, %v103, %v99
    %v105 = vadd.s32 %v100, %v104
    %v106 = vadd.s32 %v105, 536870912
    %v107 = vshrl.u32 %v106, 30
    %v108 = vshll.u32 %v107, 30
    %v109 = vsub.s32 %v105, %v108
    %vm110 = vcmp.lt.s32.totalorder %v109, 0
    %v111 = vsub.s32 0, %v109
    %v112 = vsel %vm110, %v111, %v109
    %v113 = vclz %v112
    %v114 = vsub.s32 %v113, 2
    %vm115 = vcmp.gt.s32.totalorder 0, %v114
    %v116 = vsel %vm115, 0, %v114
    %v117 = vsub.s32 32, %v116
    %v118 = vshll.u32 %v109, %v116
    %v119 = vshrl.u32 %v101, %v117
    %v120 = vor.u32 %v118, %v119
    %v121 = vsub.s32 4294967266, %v116
    %v122 = vadd.s32 %v121, 127
    %v123 = vshll.u32 %v122, 23
    %v124 = vor.u32 4788187, %v123
    %v125 = vand.u32 2147483647, %v124
    %v127 = vcvt.s32.f32 %v120
    %v128 = vmul.f32 %v127, %v125
    %v129 = vxor.u32 %v128, 2147483648
    %v130 = vsel %vm47, %v129, %v128
    %v131 = vsub.s32 4, %v107
    %v132 = vsel %vm47, %v131, %v107
    %v133 = vsel %vm46, %v44, %v130
    %v134 = vsel %vm46, 0, %v132
    %v135 = vcosq.f32.pop %v133
    %v136 = vsinq.f32.pop %v133
    %vm137 = vweird.f32 %v44
    %v138 = vand.u32 %v134, 3
    %vm139 = vcmp.lt.s32.totalorder %v138, 2
    %vm140 = vcmp.eq.s32.totalorder %v138, 0
    %v141 = vxor.u32 %v136, 2147483648
    %v142 = vsel %vm140, %v135, %v141
    %vm143 = vcmp.eq.s32.totalorder %v138, 2
    %v144 = vxor.u32 %v135, 2147483648
    %v145 = vsel %vm143, %v144, %v136
    %v146 = vsel %vm139, %v142, %v145
    %v147 = vsel %vm137, nan, %v146
    %148 = vst [vmem:[#allocation2] sm:$0xff] %v147
    %v149 = vand.u32 2147483647, %v44
    %vm150 = vcmp.le.f32.partialorder %v149, 0.7853982
    %vm151 = vcmp.lt.s32.totalorder %v44, 0
    %v152 = vand.u32 %v44, 2139095040
    %v153 = vshrl.u32 %v152, 23
    %v154 = vsub.s32 %v153, 127
    %v155 = vand.u32 2147483647, %v44
    %v156 = vand.u32 %v155, 8388607
    %v157 = vor.u32 %v156, 8388608
    %v158 = vsub.s32 0, %v157
    %v159 = vadd.s32 %v154, 1
    %vm160 = vcmp.gt.s32.totalorder %v159, 0
    %v161 = vsel %vm160, %v159, 0
    %v162 = vshrl.u32 %v161, 5
    %v163 = vand.u32 %v161, 31
    %v164 = vsub.s32 32, %v163
    %v165 = vshrl.u32 683565275, %v164
    %v166 = vshll.u32 683565275, %v163
    %v167 = vshrl.u32 2475754826, %v164
    %v168 = vor.u32 %v166, %v167
    %v169 = vshll.u32 2475754826, %v163
    %v170 = vshrl.u32 2131351028, %v164
    %v171 = vor.u32 %v169, %v170
    %v172 = vshll.u32 2131351028, %v163
    %v173 = vshrl.u32 2102212464, %v164
    %v174 = vor.u32 %v172, %v173
    %v175 = vshll.u32 2102212464, %v163
    %v176 = vshrl.u32 920167782, %v164
    %v177 = vor.u32 %v175, %v176
    %v178 = vshll.u32 920167782, %v163
    %v179 = vshrl.u32 1326507024, %v164
    %v180 = vor.u32 %v178, %v179
    %vm181 = vcmp.lt.s32.totalorder %v162, 1
    %vm182 = vcmp.lt.s32.totalorder %v162, 2
    %vm183 = vcmp.lt.s32.totalorder %v162, 3
    %vm184 = vcmp.lt.s32.totalorder %v162, 4
    %v185 = vsel %vm181, %v165, %v168
    %v186 = vsel %vm184, %v174, 2102212464
    %v187 = vsel %vm183, %v171, %v186
    %v188 = vsel %vm182, %v185, %v187
    %v189 = vsel %vm181, %v168, %v171
    %v190 = vsel %vm184, %v177, 920167782
    %v191 = vsel %vm183, %v174, %v190
    %v192 = vsel %vm182, %v189, %v191
    %v193 = vsel %vm181, %v171, %v174
    %v194 = vsel %vm184, %v180, 1326507024
    %v195 = vsel %vm183, %v177, %v194
    %v196 = vsel %vm182, %v193, %v195
    %v197 = vshll.u32 %v157, 8
    %v198 = vmul.u32.u64.compose %v197, %v196
    %v199 = vextract.low.u32 %v198
    %v200 = vextract.high.u32 %v198
    %v201 = vmul.u32.u64.compose %v197, %v192
    %v202 = vextract.low.u32 %v201
    %v203 = vextract.high.u32 %v201
    %v204 = vmul.u32 %v197, %v188
    %v205 = vadd.s32 %v200, %v202
    %vm206 = vc.u32 %v200, %v202
    %v207 = vadd.s32 %v203, 1
    %v208 = vsel %vm206, %v207, %v203
    %v209 = vadd.s32 %v204, %v208
    %v210 = vadd.s32 %v209, 536870912
    %v211 = vshrl.u32 %v210, 30
    %v212 = vshll.u32 %v211, 30
    %v213 = vsub.s32 %v209, %v212
    %vm214 = vcmp.lt.s32.totalorder %v213, 0
    %v215 = vsub.s32 0, %v213
    %v216 = vsel %vm214, %v215, %v213
    %v217 = vclz %v216
    %v218 = vsub.s32 %v217, 2
    %vm219 = vcmp.gt.s32.totalorder 0, %v218
    %v220 = vsel %vm219, 0, %v218
    %v221 = vsub.s32 32, %v220
    %v222 = vshll.u32 %v213, %v220
    %v223 = vshrl.u32 %v205, %v221
    %v224 = vor.u32 %v222, %v223
    %v225 = vsub.s32 4294967266, %v220
    %v226 = vadd.s32 %v225, 127
    %v227 = vshll.u32 %v226, 23
    %v228 = vor.u32 4788187, %v227
    %v229 = vand.u32 2147483647, %v228
    %v231 = vcvt.s32.f32 %v224
    %v232 = vmul.f32 %v231, %v229
    %v233 = vxor.u32 %v232, 2147483648
    %v234 = vsel %vm151, %v233, %v232
    %v235 = vsub.s32 4, %v211
    %v236 = vsel %vm151, %v235, %v211
    %v237 = vsel %vm150, %v44, %v234
    %v238 = vsel %vm150, 0, %v236
    %v239 = vcosq.f32.pop %v237
    %v240 = vsinq.f32.pop %v237
    %vm241 = vweird.f32 %v44
    %v242 = vadd.s32 %v238, 3
    %v243 = vand.u32 %v242, 3
    %vm244 = vcmp.lt.s32.totalorder %v243, 2
    %vm245 = vcmp.eq.s32.totalorder %v243, 0
    %v246 = vxor.u32 %v240, 2147483648
    %v247 = vsel %vm245, %v239, %v246
    %vm248 = vcmp.eq.s32.totalorder %v243, 2
    %v249 = vxor.u32 %v239, 2147483648
    %v250 = vsel %vm248, %v249, %v240
    %v251 = vsel %vm244, %v247, %v250
    %v252 = vsel %vm241, nan, %v251
    %253 = vst [vmem:[#allocation4] sm:$0xff] %v252
    // Predicated region
    $region14: #{tpu_custom_call.1} parent=1 // pred_check
      _
    $region15: #{tpu_custom_call.1} parent=1 // pred_check_branch
      %255 = sbr.rel (0) target = $region17
    $region16: #{tpu_custom_call.1} parent=1 // pred_region
      %s257 = ssub.s32 128, 128
      %258 = vsyncadd [#allocation3], %s257
      %s260 = sshll.u32 [#allocation2], 4
      %s261 = int_to_ptr.vmem [resolvable:$true] %s260
      %263 = dma.vmem_to_hbm [thread:$0]  %s261, 128, %s3, [#allocation3]
    $region17: #{tpu_custom_call.1} parent=1 // pred_fallthru
      _
    // Predicated region
    $region18: #{tpu_custom_call.1} parent=1 // pred_check
      _
    $region19: #{tpu_custom_call.1} parent=1 // pred_check_branch
      %265 = sbr.rel (0) target = $region21
    $region20: #{tpu_custom_call.1} parent=1 // pred_region
      %s267 = ssub.s32 128, 128
      %268 = vsyncadd [#allocation5], %s267
      %s270 = sshll.u32 [#allocation4], 4
      %s271 = int_to_ptr.vmem [resolvable:$true] %s270
      %273 = dma.vmem_to_hbm [thread:$0]  %s271, 128, %s4, [#allocation5]
    $region21: #{tpu_custom_call.1} parent=1 // pred_fallthru
      _
    // Predicated region
    $region22: #{tpu_custom_call.1} parent=1 // pred_check
      _
    $region23: #{tpu_custom_call.1} parent=1 // pred_check_branch
      %275 = sbr.rel (0) target = $region25
    $region24: #{tpu_custom_call.1} parent=1 // pred_region
      %276 = dma.done [#allocation3], 128
    $region25: #{tpu_custom_call.1} parent=1 // pred_fallthru
      _
    // Predicated region
    $region26: #{tpu_custom_call.1} parent=1 // pred_check
      _
    $region27: #{tpu_custom_call.1} parent=1 // pred_check_branch
      %278 = sbr.rel (0) target = $region29
    $region28: #{tpu_custom_call.1} parent=1 // pred_region
      %279 = dma.done [#allocation5], 128
    $region29: #{tpu_custom_call.1} parent=1 // pred_fallthru
      _
    %280 = vsyncpa [#allocation3], 1
    %281 = vsyncpa [#allocation5], 1

</llo_original>
